<compile_context>
chip_gen: v6e
topology: v6e:2x2x1
jax: 0.10.0
libtpu: 0.0.40
codegen_flags: <defaults>
</compile_context>

<pallas_src>
import jax
import jax.numpy as jnp
from jax.experimental import pallas as pl
from jax.experimental.pallas import tpu as pltpu

# ---------------- config (synthetic cfg) ----------------
NUM_CLASSES = 2          # cls_logits last dim
NUM_ANCHORS = 2          # anchors per spatial location
CENTER_VARIANCE = 0.1    # cfg.MODEL.CENTER_VARIANCE
SIZE_VARIANCE = 0.2      # cfg.MODEL.SIZE_VARIANCE
ANCHOR_SCALES = (0.1, 0.2)
COMPUTE_DTYPE = jnp.bfloat16   # MXU input dtype (f32 accumulation); set jnp.float32 for exact math

# 3x3 taps enumerated row-major == ravel order of the (kh, kw, cin) weight axes.
_TAPS = tuple((dh, dw) for dh in (-1, 0, 1) for dw in (-1, 0, 1))


# ---------------- fused Pallas kernel: conv3x3 (cls+reg) + softmax + box decode ----------------
def _build_rpn_head_kernel(H, W, num_anchors, num_classes):
    HW = H * W
    cls_rows = num_anchors * num_classes

    def kernel(x_ref, w_ref, b_ref, anc_ref, mask_ref, scores_ref, boxes_ref):
        # x_ref:      (1, Cin, HW)   one image, spatial flattened on the lane axis (bf16)
        # w_ref:      (Cout, 9*Cin)  fused cls+reg conv weights, rows tap-major (bf16)
        # b_ref:      (Cout, 1)      fused bias (f32)
        # anc_ref:    (A, 4, HW)     center-form priors per anchor: rows cx, cy, w, h (f32)
        # mask_ref:   (9, 1, HW)     per-tap validity masks (zero padding) (f32)
        # scores_ref: (1, A, C, HW)  softmax scores (f32)
        # boxes_ref:  (1, A, 4, HW)  corner-form boxes, normalized (f32)
        x = x_ref[0].astype(jnp.float32)                    # (Cin, HW)

        # ---- im2col via lane rolls: col[t*Cin + c, p] = x[c, p + dh*W + dw] (0 if OOB).
        # want shifted[c, p] = x[c, (p + s) % HW]  ==  roll(x, -s) in jnp.roll convention.
        cols = []
        for t, (dh, dw) in enumerate(_TAPS):
            s = dh * W + dw
            if s == 0:
                cols.append(x)
            else:
                shifted = pltpu.roll(x, (-s) % HW, 1)       # XLU lane rotate
                cols.append(shifted * mask_ref[t])          # (Cin, HW) * (1, HW)
        col = jnp.concatenate(cols, axis=0)                 # (9*Cin, HW)

        # ---- fused cls+reg 3x3 conv: single MXU matmul, K = 9*Cin, HW on lanes.
        conv = jnp.dot(w_ref[...], col.astype(w_ref.dtype),
                       preferred_element_type=jnp.float32) + b_ref[...]   # (Cout, HW) f32

        # ---- decode epilogue (pure VPU/EUP row ops, HW on lanes).
        for a in range(num_anchors):
            # softmax over the C class rows of this anchor
            logits = conv[a * num_classes:(a + 1) * num_classes, :]       # (C, HW)
            m = logits[0:1, :]
            for c in range(1, num_classes):
                m = jnp.maximum(m, logits[c:c + 1, :])
            e = jnp.exp(logits - m)
            den = e[0:1, :]
            for c in range(1, num_classes):
                den = den + e[c:c + 1, :]
            scores_ref[0, a, :, :] = e * pl.reciprocal(den, approx=True)

            # convert_locations_to_boxes + center_form_to_corner_form
            loc = conv[cls_rows + 4 * a: cls_rows + 4 * (a + 1), :]       # rows: dcx, dcy, dw, dh
            anc = anc_ref[a]                                              # rows: cx, cy, w, h
            cxy = loc[0:2, :] * CENTER_VARIANCE * anc[2:4, :] + anc[0:2, :]
            wh = jnp.exp(loc[2:4, :] * SIZE_VARIANCE) * anc[2:4, :]
            boxes_ref[0, a, :, :] = jnp.concatenate(
                [cxy - 0.5 * wh, cxy + 0.5 * wh], axis=0)                 # xmin, ymin, xmax, ymax

    return kernel


# ---------------- glue: anchors, masks, weight packing ----------------
def _make_anchor_rows(H, W, scales=ANCHOR_SCALES):
    """Center-form priors laid out (A, 4, H*W): rows (cx, cy, w, h); lane p = h*W + w."""
    p = jnp.arange(H * W, dtype=jnp.int32)
    cx = ((p % W).astype(jnp.float32) + 0.5) / W
    cy = ((p // W).astype(jnp.float32) + 0.5) / H
    per_anchor = []
    for s in scales:
        sz = jnp.full_like(cx, s)
        per_anchor.append(jnp.stack([cx, cy, sz, sz], axis=0))   # (4, HW)
    return jnp.clip(jnp.stack(per_anchor, axis=0), 0.0, 1.0)     # (A, 4, HW)


def _make_tap_masks(H, W):
    """(9, 1, H*W) f32 validity masks implementing zero padding for each 3x3 tap."""
    p = jnp.arange(H * W, dtype=jnp.int32)
    h_idx = p // W
    w_idx = p % W
    masks = []
    for dh, dw in _TAPS:
        ok = ((h_idx + dh >= 0) & (h_idx + dh < H) &
              (w_idx + dw >= 0) & (w_idx + dw < W))
        masks.append(ok.astype(jnp.float32)[None, :])            # (1, HW)
    return jnp.stack(masks, axis=0)                              # (9, 1, HW)


def _pack_predictor(params):
    """Fuse cls/reg conv weights into (Cout, 9*Cin) with row order (kh, kw, cin)."""
    w = jnp.concatenate([params["cls_w"], params["reg_w"]], axis=-1)     # (3, 3, Cin, Cout)
    cin, cout = w.shape[2], w.shape[3]
    w_packed = w.reshape(9 * cin, cout).T.astype(COMPUTE_DTYPE)          # (Cout, 9*Cin)
    b_packed = jnp.concatenate([params["cls_b"], params["reg_b"]]
                               ).reshape(cout, 1).astype(jnp.float32)    # (Cout, 1)
    return w_packed, b_packed


def init_predictor_params(key, in_channels):
    k1, k2 = jax.random.split(key)
    cls_out = NUM_ANCHORS * NUM_CLASSES
    reg_out = NUM_ANCHORS * 4
    cls_w = 0.1 * jax.random.normal(k1, (3, 3, in_channels, cls_out), jnp.float32)
    cls_b = jnp.zeros((cls_out,), jnp.float32)
    reg_w = 0.1 * jax.random.normal(k2, (3, 3, in_channels, reg_out), jnp.float32)
    reg_b = jnp.zeros((reg_out,), jnp.float32)
    return dict(cls_w=cls_w, cls_b=cls_b, reg_w=reg_w, reg_b=reg_b)


# ---------------- forward ----------------
def rpn_box_head_forward(features_nchw, params, image_h, image_w):
    """Inference path of RPNBoxHead. features: (N, Cin, H, W) -> (scores, boxes)."""
    N, Cin, H, W = features_nchw.shape
    HW = H * W
    A, C = NUM_ANCHORS, NUM_CLASSES
    Cout = A * (C + 4)

    # NCHW already has H*W adjacent to the lane axis: flattening is a free metadata
    # reshape (no NHWC transpose, no jnp.pad); bf16 halves the feature-map HBM read.
    x_flat = features_nchw.reshape(N, Cin, HW).astype(COMPUTE_DTYPE)

    w_packed, b_packed = _pack_predictor(params)    # (Cout, 9*Cin), (Cout, 1)
    anchors = _make_anchor_rows(H, W)               # (A, 4, HW)
    masks = _make_tap_masks(H, W)                   # (9, 1, HW)

    kernel = _build_rpn_head_kernel(H, W, A, C)
    scores_raw, boxes_raw = pl.pallas_call(
        kernel,
        out_shape=(
            jax.ShapeDtypeStruct((N, A, C, HW), jnp.float32),
            jax.ShapeDtypeStruct((N, A, 4, HW), jnp.float32),
        ),
        grid_spec=pltpu.PrefetchScalarGridSpec(
            num_scalar_prefetch=0,
            grid=(N,),
            in_specs=[
                pl.BlockSpec((1, Cin, HW), lambda n: (n, 0, 0)),
                pl.BlockSpec((Cout, 9 * Cin), lambda n: (0, 0)),
                pl.BlockSpec((Cout, 1), lambda n: (0, 0)),
                pl.BlockSpec((A, 4, HW), lambda n: (0, 0, 0)),
                pl.BlockSpec((9, 1, HW), lambda n: (0, 0, 0)),
            ],
            out_specs=[
                pl.BlockSpec((1, A, C, HW), lambda n: (n, 0, 0, 0)),
                pl.BlockSpec((1, A, 4, HW), lambda n: (n, 0, 0, 0)),
            ],
        ),
        compiler_params=pltpu.CompilerParams(
            dimension_semantics=("parallel",)),     # batch axis -> both v7x TensorCores
    )(x_flat, w_packed, b_packed, anchors, masks)

    # (N, A, C|4, HW) -> reference layout (N, M, C|4) with M = (h*W + w)*A + a.
    scores = jnp.transpose(scores_raw, (0, 3, 1, 2)).reshape(N, HW * A, C)
    boxes = jnp.transpose(boxes_raw, (0, 3, 1, 2)).reshape(N, HW * A, 4)

    # PostProcessor scaling of normalized corner boxes to image coordinates.
    scale = jnp.asarray([image_w, image_h, image_w, image_h], jnp.float32)
    return scores, boxes * scale


if __name__ == "__main__":
    key = jax.random.PRNGKey(0)
    k_feat, k_par = jax.random.split(key)

    N, Cin, H, W = 2, 4, 16, 16
    features = jax.random.normal(k_feat, (N, Cin, H, W), jnp.float32)
    params = init_predictor_params(k_par, Cin)

    image_h, image_w = 320, 320
    scores, boxes = rpn_box_head_forward(features, params, image_h, image_w)
    jax.block_until_ready((scores, boxes))

    assert scores.shape == (N, H * W * NUM_ANCHORS, NUM_CLASSES)
    assert boxes.shape == (N, H * W * NUM_ANCHORS, 4)
    print("KERNEL_OK")
</pallas_src>

<mosaic_0001>
module attributes {stable_mosaic.version = 11 : i64} {
  func.func @kernel(%arg0: i32, %arg1: memref<1x4x256xbf16, #tpu.memory_space<vmem>>, %arg2: memref<12x36xbf16, #tpu.memory_space<vmem>>, %arg3: memref<12x1xf32, #tpu.memory_space<vmem>>, %arg4: memref<2x4x256xf32, #tpu.memory_space<vmem>>, %arg5: memref<9x1x256xf32, #tpu.memory_space<vmem>>, %arg6: memref<1x2x2x256xf32, #tpu.memory_space<vmem>>, %arg7: memref<1x2x4x256xf32, #tpu.memory_space<vmem>>) attributes {dimension_semantics = [#tpu.dimension_semantics<parallel>], iteration_bounds = array<i64: 2>, scalar_prefetch = 0 : i64, scratch_operands = 0 : i64, tpu.core_type = #tpu.core_type<tc>, window_params = [{transform_indices = @transform_0, window_bounds = array<i64: 1, 4, 256>}, {pipeline_mode = #tpu.pipeline_mode<synchronous>, transform_indices = @transform_1, window_bounds = array<i64: 12, 36>}, {pipeline_mode = #tpu.pipeline_mode<synchronous>, transform_indices = @transform_2, window_bounds = array<i64: 12, 1>}, {pipeline_mode = #tpu.pipeline_mode<synchronous>, transform_indices = @transform_3, window_bounds = array<i64: 2, 4, 256>}, {pipeline_mode = #tpu.pipeline_mode<synchronous>, transform_indices = @transform_4, window_bounds = array<i64: 9, 1, 256>}, {transform_indices = @transform_5, window_bounds = array<i64: 1, 2, 2, 256>}, {transform_indices = @transform_6, window_bounds = array<i64: 1, 2, 4, 256>}]} {
    %c0 = arith.constant 0 : index
    %c0_0 = arith.constant 0 : index
    %c0_1 = arith.constant 0 : index
    %0 = vector.load %arg1[%c0, %c0_0, %c0_1] : memref<1x4x256xbf16, #tpu.memory_space<vmem>>, vector<1x4x256xbf16>
    %1 = vector.shape_cast %0 : vector<1x4x256xbf16> to vector<4x256xbf16>
    %2 = arith.extf %1 : vector<4x256xbf16> to vector<4x256xf32>
    %c17_i32 = arith.constant 17 : i32
    %3 = tpu.dynamic_rotate %2 by %c17_i32 dim 1 : vector<4x256xf32>, i32 -> vector<4x256xf32>
    %c0_2 = arith.constant 0 : index
    %c0_3 = arith.constant 0 : index
    %c0_4 = arith.constant 0 : index
    %4 = vector.load %arg5[%c0_2, %c0_3, %c0_4] : memref<9x1x256xf32, #tpu.memory_space<vmem>>, vector<1x1x256xf32>
    %5 = vector.shape_cast %4 : vector<1x1x256xf32> to vector<1x256xf32>
    %6 = vector.broadcast %5 : vector<1x256xf32> to vector<4x256xf32>
    %7 = arith.mulf %3, %6 : vector<4x256xf32>
    %c16_i32 = arith.constant 16 : i32
    %8 = tpu.dynamic_rotate %2 by %c16_i32 dim 1 : vector<4x256xf32>, i32 -> vector<4x256xf32>
    %c1 = arith.constant 1 : index
    %c0_5 = arith.constant 0 : index
    %c0_6 = arith.constant 0 : index
    %9 = vector.load %arg5[%c1, %c0_5, %c0_6] : memref<9x1x256xf32, #tpu.memory_space<vmem>>, vector<1x1x256xf32>
    %10 = vector.shape_cast %9 : vector<1x1x256xf32> to vector<1x256xf32>
    %11 = vector.broadcast %10 : vector<1x256xf32> to vector<4x256xf32>
    %12 = arith.mulf %8, %11 : vector<4x256xf32>
    %c15_i32 = arith.constant 15 : i32
    %13 = tpu.dynamic_rotate %2 by %c15_i32 dim 1 : vector<4x256xf32>, i32 -> vector<4x256xf32>
    %c2 = arith.constant 2 : index
    %c0_7 = arith.constant 0 : index
    %c0_8 = arith.constant 0 : index
    %14 = vector.load %arg5[%c2, %c0_7, %c0_8] : memref<9x1x256xf32, #tpu.memory_space<vmem>>, vector<1x1x256xf32>
    %15 = vector.shape_cast %14 : vector<1x1x256xf32> to vector<1x256xf32>
    %16 = vector.broadcast %15 : vector<1x256xf32> to vector<4x256xf32>
    %17 = arith.mulf %13, %16 : vector<4x256xf32>
    %c1_i32 = arith.constant 1 : i32
    %18 = tpu.dynamic_rotate %2 by %c1_i32 dim 1 : vector<4x256xf32>, i32 -> vector<4x256xf32>
    %c3 = arith.constant 3 : index
    %c0_9 = arith.constant 0 : index
    %c0_10 = arith.constant 0 : index
    %19 = vector.load %arg5[%c3, %c0_9, %c0_10] : memref<9x1x256xf32, #tpu.memory_space<vmem>>, vector<1x1x256xf32>
    %20 = vector.shape_cast %19 : vector<1x1x256xf32> to vector<1x256xf32>
    %21 = vector.broadcast %20 : vector<1x256xf32> to vector<4x256xf32>
    %22 = arith.mulf %18, %21 : vector<4x256xf32>
    %c255_i32 = arith.constant 255 : i32
    %23 = tpu.dynamic_rotate %2 by %c255_i32 dim 1 : vector<4x256xf32>, i32 -> vector<4x256xf32>
    %c5 = arith.constant 5 : index
    %c0_11 = arith.constant 0 : index
    %c0_12 = arith.constant 0 : index
    %24 = vector.load %arg5[%c5, %c0_11, %c0_12] : memref<9x1x256xf32, #tpu.memory_space<vmem>>, vector<1x1x256xf32>
    %25 = vector.shape_cast %24 : vector<1x1x256xf32> to vector<1x256xf32>
    %26 = vector.broadcast %25 : vector<1x256xf32> to vector<4x256xf32>
    %27 = arith.mulf %23, %26 : vector<4x256xf32>
    %c241_i32 = arith.constant 241 : i32
    %28 = tpu.dynamic_rotate %2 by %c241_i32 dim 1 : vector<4x256xf32>, i32 -> vector<4x256xf32>
    %c6 = arith.constant 6 : index
    %c0_13 = arith.constant 0 : index
    %c0_14 = arith.constant 0 : index
    %29 = vector.load %arg5[%c6, %c0_13, %c0_14] : memref<9x1x256xf32, #tpu.memory_space<vmem>>, vector<1x1x256xf32>
    %30 = vector.shape_cast %29 : vector<1x1x256xf32> to vector<1x256xf32>
    %31 = vector.broadcast %30 : vector<1x256xf32> to vector<4x256xf32>
    %32 = arith.mulf %28, %31 : vector<4x256xf32>
    %c240_i32 = arith.constant 240 : i32
    %33 = tpu.dynamic_rotate %2 by %c240_i32 dim 1 : vector<4x256xf32>, i32 -> vector<4x256xf32>
    %c7 = arith.constant 7 : index
    %c0_15 = arith.constant 0 : index
    %c0_16 = arith.constant 0 : index
    %34 = vector.load %arg5[%c7, %c0_15, %c0_16] : memref<9x1x256xf32, #tpu.memory_space<vmem>>, vector<1x1x256xf32>
    %35 = vector.shape_cast %34 : vector<1x1x256xf32> to vector<1x256xf32>
    %36 = vector.broadcast %35 : vector<1x256xf32> to vector<4x256xf32>
    %37 = arith.mulf %33, %36 : vector<4x256xf32>
    %c239_i32 = arith.constant 239 : i32
    %38 = tpu.dynamic_rotate %2 by %c239_i32 dim 1 : vector<4x256xf32>, i32 -> vector<4x256xf32>
    %c8 = arith.constant 8 : index
    %c0_17 = arith.constant 0 : index
    %c0_18 = arith.constant 0 : index
    %39 = vector.load %arg5[%c8, %c0_17, %c0_18] : memref<9x1x256xf32, #tpu.memory_space<vmem>>, vector<1x1x256xf32>
    %40 = vector.shape_cast %39 : vector<1x1x256xf32> to vector<1x256xf32>
    %41 = vector.broadcast %40 : vector<1x256xf32> to vector<4x256xf32>
    %42 = arith.mulf %38, %41 : vector<4x256xf32>
    %43 = tpu.concatenate %7, %12, %17, %22, %2, %27, %32, %37, %42 in 0 : vector<4x256xf32>, vector<4x256xf32>, vector<4x256xf32>, vector<4x256xf32>, vector<4x256xf32>, vector<4x256xf32>, vector<4x256xf32>, vector<4x256xf32>, vector<4x256xf32> -> vector<36x256xf32>
    %c0_19 = arith.constant 0 : index
    %c0_20 = arith.constant 0 : index
    %44 = vector.load %arg2[%c0_19, %c0_20] : memref<12x36xbf16, #tpu.memory_space<vmem>>, vector<12x36xbf16>
    %45 = arith.truncf %43 : vector<36x256xf32> to vector<36x256xbf16>
    %cst = arith.constant dense<0.000000e+00> : vector<12x256xf32>
    %46 = tpu.matmul %44, %45, %cst {dimension_numbers = #tpu.dot_dimension_numbers<[1], [0], [0], [1], [0, 0, 1, 1], [], []>} : vector<12x36xbf16>, vector<36x256xbf16>, vector<12x256xf32> -> vector<12x256xf32>
    %c0_21 = arith.constant 0 : index
    %c0_22 = arith.constant 0 : index
    %47 = vector.load %arg3[%c0_21, %c0_22] : memref<12x1xf32, #tpu.memory_space<vmem>>, vector<12x1xf32>
    %48 = vector.broadcast %47 : vector<12x1xf32> to vector<12x256xf32>
    %49 = arith.addf %46, %48 : vector<12x256xf32>
    %50 = vector.extract_strided_slice %49 {offsets = [0, 0], sizes = [2, 256], strides = [1, 1]} : vector<12x256xf32> to vector<2x256xf32>
    %51 = vector.extract_strided_slice %50 {offsets = [0, 0], sizes = [1, 256], strides = [1, 1]} : vector<2x256xf32> to vector<1x256xf32>
    %52 = vector.extract_strided_slice %50 {offsets = [1, 0], sizes = [1, 256], strides = [1, 1]} : vector<2x256xf32> to vector<1x256xf32>
    %53 = arith.maximumf %51, %52 : vector<1x256xf32>
    %54 = vector.broadcast %53 : vector<1x256xf32> to vector<2x256xf32>
    %55 = arith.subf %50, %54 : vector<2x256xf32>
    %56 = math.exp %55 : vector<2x256xf32>
    %57 = vector.extract_strided_slice %56 {offsets = [0, 0], sizes = [1, 256], strides = [1, 1]} : vector<2x256xf32> to vector<1x256xf32>
    %58 = vector.extract_strided_slice %56 {offsets = [1, 0], sizes = [1, 256], strides = [1, 1]} : vector<2x256xf32> to vector<1x256xf32>
    %59 = arith.addf %57, %58 : vector<1x256xf32>
    %60 = tpu.reciprocal %59 {approx = true} : vector<1x256xf32> -> vector<1x256xf32>
    %61 = vector.broadcast %60 : vector<1x256xf32> to vector<2x256xf32>
    %62 = arith.mulf %56, %61 : vector<2x256xf32>
    %c0_23 = arith.constant 0 : index
    %c0_24 = arith.constant 0 : index
    %c0_25 = arith.constant 0 : index
    %c0_26 = arith.constant 0 : index
    %63 = vector.load %arg6[%c0_23, %c0_24, %c0_25, %c0_26] : memref<1x2x2x256xf32, #tpu.memory_space<vmem>>, vector<1x1x2x256xf32>
    %64 = vector.shape_cast %63 : vector<1x1x2x256xf32> to vector<2x256xf32>
    %65 = vector.shape_cast %62 : vector<2x256xf32> to vector<1x1x2x256xf32>
    tpu.vector_store %arg6[%c0_23, %c0_24, %c0_25, %c0_26], %65 {strides = array<i32>} : memref<1x2x2x256xf32, #tpu.memory_space<vmem>>, vector<1x1x2x256xf32>,
    %66 = vector.extract_strided_slice %49 {offsets = [4, 0], sizes = [4, 256], strides = [1, 1]} : vector<12x256xf32> to vector<4x256xf32>
    %c0_27 = arith.constant 0 : index
    %c0_28 = arith.constant 0 : index
    %c0_29 = arith.constant 0 : index
    %67 = vector.load %arg4[%c0_27, %c0_28, %c0_29] : memref<2x4x256xf32, #tpu.memory_space<vmem>>, vector<1x4x256xf32>
    %68 = vector.shape_cast %67 : vector<1x4x256xf32> to vector<4x256xf32>
    %69 = vector.extract_strided_slice %66 {offsets = [0, 0], sizes = [2, 256], strides = [1, 1]} : vector<4x256xf32> to vector<2x256xf32>
    %cst_30 = arith.constant 1.000000e-01 : f32
    %70 = vector.broadcast %cst_30 : f32 to vector<2x256xf32>
    %71 = arith.mulf %69, %70 : vector<2x256xf32>
    %72 = vector.extract_strided_slice %68 {offsets = [2, 0], sizes = [2, 256], strides = [1, 1]} : vector<4x256xf32> to vector<2x256xf32>
    %73 = arith.mulf %71, %72 : vector<2x256xf32>
    %74 = vector.extract_strided_slice %68 {offsets = [0, 0], sizes = [2, 256], strides = [1, 1]} : vector<4x256xf32> to vector<2x256xf32>
    %75 = arith.addf %73, %74 : vector<2x256xf32>
    %76 = vector.extract_strided_slice %66 {offsets = [2, 0], sizes = [2, 256], strides = [1, 1]} : vector<4x256xf32> to vector<2x256xf32>
    %cst_31 = arith.constant 2.000000e-01 : f32
    %77 = vector.broadcast %cst_31 : f32 to vector<2x256xf32>
    %78 = arith.mulf %76, %77 : vector<2x256xf32>
    %79 = math.exp %78 : vector<2x256xf32>
    %80 = vector.extract_strided_slice %68 {offsets = [2, 0], sizes = [2, 256], strides = [1, 1]} : vector<4x256xf32> to vector<2x256xf32>
    %81 = arith.mulf %79, %80 : vector<2x256xf32>
    %cst_32 = arith.constant 5.000000e-01 : f32
    %82 = vector.broadcast %cst_32 : f32 to vector<2x256xf32>
    %83 = arith.mulf %82, %81 : vector<2x256xf32>
    %84 = arith.subf %75, %83 : vector<2x256xf32>
    %cst_33 = arith.constant 5.000000e-01 : f32
    %85 = vector.broadcast %cst_33 : f32 to vector<2x256xf32>
    %86 = arith.mulf %85, %81 : vector<2x256xf32>
    %87 = arith.addf %75, %86 : vector<2x256xf32>
    %88 = tpu.concatenate %84, %87 in 0 : vector<2x256xf32>, vector<2x256xf32> -> vector<4x256xf32>
    %c0_34 = arith.constant 0 : index
    %c0_35 = arith.constant 0 : index
    %c0_36 = arith.constant 0 : index
    %c0_37 = arith.constant 0 : index
    %89 = vector.load %arg7[%c0_34, %c0_35, %c0_36, %c0_37] : memref<1x2x4x256xf32, #tpu.memory_space<vmem>>, vector<1x1x4x256xf32>
    %90 = vector.shape_cast %89 : vector<1x1x4x256xf32> to vector<4x256xf32>
    %91 = vector.shape_cast %88 : vector<4x256xf32> to vector<1x1x4x256xf32>
    tpu.vector_store %arg7[%c0_34, %c0_35, %c0_36, %c0_37], %91 {strides = array<i32>} : memref<1x2x4x256xf32, #tpu.memory_space<vmem>>, vector<1x1x4x256xf32>,
    %92 = vector.extract_strided_slice %49 {offsets = [2, 0], sizes = [2, 256], strides = [1, 1]} : vector<12x256xf32> to vector<2x256xf32>
    %93 = vector.extract_strided_slice %92 {offsets = [0, 0], sizes = [1, 256], strides = [1, 1]} : vector<2x256xf32> to vector<1x256xf32>
    %94 = vector.extract_strided_slice %92 {offsets = [1, 0], sizes = [1, 256], strides = [1, 1]} : vector<2x256xf32> to vector<1x256xf32>
    %95 = arith.maximumf %93, %94 : vector<1x256xf32>
    %96 = vector.broadcast %95 : vector<1x256xf32> to vector<2x256xf32>
    %97 = arith.subf %92, %96 : vector<2x256xf32>
    %98 = math.exp %97 : vector<2x256xf32>
    %99 = vector.extract_strided_slice %98 {offsets = [0, 0], sizes = [1, 256], strides = [1, 1]} : vector<2x256xf32> to vector<1x256xf32>
    %100 = vector.extract_strided_slice %98 {offsets = [1, 0], sizes = [1, 256], strides = [1, 1]} : vector<2x256xf32> to vector<1x256xf32>
    %101 = arith.addf %99, %100 : vector<1x256xf32>
    %102 = tpu.reciprocal %101 {approx = true} : vector<1x256xf32> -> vector<1x256xf32>
    %103 = vector.broadcast %102 : vector<1x256xf32> to vector<2x256xf32>
    %104 = arith.mulf %98, %103 : vector<2x256xf32>
    %c0_38 = arith.constant 0 : index
    %c1_39 = arith.constant 1 : index
    %c0_40 = arith.constant 0 : index
    %c0_41 = arith.constant 0 : index
    %105 = vector.load %arg6[%c0_38, %c1_39, %c0_40, %c0_41] : memref<1x2x2x256xf32, #tpu.memory_space<vmem>>, vector<1x1x2x256xf32>
    %106 = vector.shape_cast %105 : vector<1x1x2x256xf32> to vector<2x256xf32>
    %107 = vector.shape_cast %104 : vector<2x256xf32> to vector<1x1x2x256xf32>
    tpu.vector_store %arg6[%c0_38, %c1_39, %c0_40, %c0_41], %107 {strides = array<i32>} : memref<1x2x2x256xf32, #tpu.memory_space<vmem>>, vector<1x1x2x256xf32>,
    %108 = vector.extract_strided_slice %49 {offsets = [8, 0], sizes = [4, 256], strides = [1, 1]} : vector<12x256xf32> to vector<4x256xf32>
    %c1_42 = arith.constant 1 : index
    %c0_43 = arith.constant 0 : index
    %c0_44 = arith.constant 0 : index
    %109 = vector.load %arg4[%c1_42, %c0_43, %c0_44] : memref<2x4x256xf32, #tpu.memory_space<vmem>>, vector<1x4x256xf32>
    %110 = vector.shape_cast %109 : vector<1x4x256xf32> to vector<4x256xf32>
    %111 = vector.extract_strided_slice %108 {offsets = [0, 0], sizes = [2, 256], strides = [1, 1]} : vector<4x256xf32> to vector<2x256xf32>
    %cst_45 = arith.constant 1.000000e-01 : f32
    %112 = vector.broadcast %cst_45 : f32 to vector<2x256xf32>
    %113 = arith.mulf %111, %112 : vector<2x256xf32>
    %114 = vector.extract_strided_slice %110 {offsets = [2, 0], sizes = [2, 256], strides = [1, 1]} : vector<4x256xf32> to vector<2x256xf32>
    %115 = arith.mulf %113, %114 : vector<2x256xf32>
    %116 = vector.extract_strided_slice %110 {offsets = [0, 0], sizes = [2, 256], strides = [1, 1]} : vector<4x256xf32> to vector<2x256xf32>
    %117 = arith.addf %115, %116 : vector<2x256xf32>
    %118 = vector.extract_strided_slice %108 {offsets = [2, 0], sizes = [2, 256], strides = [1, 1]} : vector<4x256xf32> to vector<2x256xf32>
    %cst_46 = arith.constant 2.000000e-01 : f32
    %119 = vector.broadcast %cst_46 : f32 to vector<2x256xf32>
    %120 = arith.mulf %118, %119 : vector<2x256xf32>
    %121 = math.exp %120 : vector<2x256xf32>
    %122 = vector.extract_strided_slice %110 {offsets = [2, 0], sizes = [2, 256], strides = [1, 1]} : vector<4x256xf32> to vector<2x256xf32>
    %123 = arith.mulf %121, %122 : vector<2x256xf32>
    %cst_47 = arith.constant 5.000000e-01 : f32
    %124 = vector.broadcast %cst_47 : f32 to vector<2x256xf32>
    %125 = arith.mulf %124, %123 : vector<2x256xf32>
    %126 = arith.subf %117, %125 : vector<2x256xf32>
    %cst_48 = arith.constant 5.000000e-01 : f32
    %127 = vector.broadcast %cst_48 : f32 to vector<2x256xf32>
    %128 = arith.mulf %127, %123 : vector<2x256xf32>
    %129 = arith.addf %117, %128 : vector<2x256xf32>
    %130 = tpu.concatenate %126, %129 in 0 : vector<2x256xf32>, vector<2x256xf32> -> vector<4x256xf32>
    %c0_49 = arith.constant 0 : index
    %c1_50 = arith.constant 1 : index
    %c0_51 = arith.constant 0 : index
    %c0_52 = arith.constant 0 : index
    %131 = vector.load %arg7[%c0_49, %c1_50, %c0_51, %c0_52] : memref<1x2x4x256xf32, #tpu.memory_space<vmem>>, vector<1x1x4x256xf32>
    %132 = vector.shape_cast %131 : vector<1x1x4x256xf32> to vector<4x256xf32>
    %133 = vector.shape_cast %130 : vector<4x256xf32> to vector<1x1x4x256xf32>
    tpu.vector_store %arg7[%c0_49, %c1_50, %c0_51, %c0_52], %133 {strides = array<i32>} : memref<1x2x4x256xf32, #tpu.memory_space<vmem>>, vector<1x1x4x256xf32>,
    return
  }
  func.func @transform_0(%arg0: i32) -> (i32, i32, i32) {
    %c0_i32 = arith.constant 0 : i32
    %c0_i32_0 = arith.constant 0 : i32
    %c0_i32_1 = arith.constant 0 : i32
    return %arg0, %c0_i32, %c0_i32_0 : i32, i32, i32
  }
  func.func @transform_1(%arg0: i32) -> (i32, i32) {
    %c0_i32 = arith.constant 0 : i32
    %c0_i32_0 = arith.constant 0 : i32
    %c0_i32_1 = arith.constant 0 : i32
    return %c0_i32, %c0_i32_0 : i32, i32
  }
  func.func @transform_2(%arg0: i32) -> (i32, i32) {
    %c0_i32 = arith.constant 0 : i32
    %c0_i32_0 = arith.constant 0 : i32
    %c0_i32_1 = arith.constant 0 : i32
    return %c0_i32, %c0_i32_0 : i32, i32
  }
  func.func @transform_3(%arg0: i32) -> (i32, i32, i32) {
    %c0_i32 = arith.constant 0 : i32
    %c0_i32_0 = arith.constant 0 : i32
    %c0_i32_1 = arith.constant 0 : i32
    %c0_i32_2 = arith.constant 0 : i32
    return %c0_i32, %c0_i32_0, %c0_i32_1 : i32, i32, i32
  }
  func.func @transform_4(%arg0: i32) -> (i32, i32, i32) {
    %c0_i32 = arith.constant 0 : i32
    %c0_i32_0 = arith.constant 0 : i32
    %c0_i32_1 = arith.constant 0 : i32
    %c0_i32_2 = arith.constant 0 : i32
    return %c0_i32, %c0_i32_0, %c0_i32_1 : i32, i32, i32
  }
  func.func @transform_5(%arg0: i32) -> (i32, i32, i32, i32) {
    %c0_i32 = arith.constant 0 : i32
    %c0_i32_0 = arith.constant 0 : i32
    %c0_i32_1 = arith.constant 0 : i32
    %c0_i32_2 = arith.constant 0 : i32
    return %arg0, %c0_i32, %c0_i32_0, %c0_i32_1 : i32, i32, i32, i32
  }
  func.func @transform_6(%arg0: i32) -> (i32, i32, i32, i32) {
    %c0_i32 = arith.constant 0 : i32
    %c0_i32_0 = arith.constant 0 : i32
    %c0_i32_1 = arith.constant 0 : i32
    %c0_i32_2 = arith.constant 0 : i32
    return %arg0, %c0_i32, %c0_i32_0, %c0_i32_1 : i32, i32, i32, i32
  }
}

</mosaic_0001>

<llo_original>
// kernel: tpu_custom_call.1
$region0: #{tpu_custom_call.1}
  #allocation0 [shape = 'u32[]', space=smem, size = 0x4, offset = 0x4, fixed_abs, tag = 'smem constant byte address 0x4 - core index']
  #allocation1 [shape = 'u32[144,128]{1,0:T(1,128)}', space=vmem, size = 0x12000, scoped, tag = 'internal scratch']
  %s0 = inlined_call_operand.hbm [shape: bf16[2,4,256], index: 0, kind: input, shape index: {}]
  %s1 = inlined_call_operand.hbm [shape: bf16[12,36], index: 1, kind: input, shape index: {}]
  %s2 = inlined_call_operand.vmem [shape: f32[12,1], index: 2, kind: input, shape index: {}]
  %s3 = inlined_call_operand.hbm [shape: f32[2,4,256], index: 3, kind: input, shape index: {}]
  %s4 = inlined_call_operand.vmem [shape: f32[9,1,256], index: 4, kind: input, shape index: {}]
  %s5 = inlined_call_operand.hbm [shape: f32[2,2,2,256], index: 5, kind: output, shape index: {0}]
  %s6 = inlined_call_operand.hbm [shape: f32[2,2,4,256], index: 6, kind: output, shape index: {1}]
  %7 = xla_tuple %s5, %s6
  %s8 = sld [smem:[#allocation0]]
  $region73: #{tpu_custom_call.1} parent=0
    _
  %s10 = ssub.s32 1, %s8
  %s11 = scalar_select 0, %s10, %s8
  $region1: #{tpu_custom_call.1} parent=0
    #allocation2 [shape = 'u8[4096]{0}', space=vmem, size = 0x1000, scoped, tag = 'input window, operand 0']
    #allocation3 [shape = 's32[2]{0}', space=sflag, size = 0x8, scoped, tag = 'scoped memory for tpu_custom_call.1']
    #allocation4 [shape = 's32[2]{0}', space=sflag, size = 0x8, scoped, tag = 'scoped memory for tpu_custom_call.1']
    #allocation5 [shape = 'u8[4096]{0}', space=vmem, size = 0x1000, scoped, tag = 'input window, operand 1, single buffered']
    #allocation6 [shape = 's32[1]{0}', space=sflag, size = 0x4, scoped, tag = 'scoped memory for tpu_custom_call.1']
    #allocation7 [shape = 'u8[8192]{0}', space=vmem, size = 0x2000, scoped, tag = 'input window, operand 3, single buffered']
    #allocation8 [shape = 'u8[8192]{0}', space=vmem, size = 0x2000, scoped, tag = 'output window, operand 0']
    #allocation9 [shape = 'u8[16384]{0}', space=vmem, size = 0x4000, scoped, tag = 'output window, operand 1']
    #allocation10 [shape = 's32[2]{0}', space=sflag, size = 0x8, scoped, tag = 'scoped memory for tpu_custom_call.1']
    %12 = vsyncpa [#allocation3], 0
    %s13 = scalar_lea.sflag [#allocation3], 1
    %14 = vsyncpa %s13, 0
    %15 = vsyncpa [#allocation6], 0
    %16 = vsyncpa [#allocation4], 0
    %s17 = scalar_lea.sflag [#allocation4], 1
    %18 = vsyncpa %s17, 0
    %19 = vsyncpa [#allocation10], 0
    %s20 = scalar_lea.sflag [#allocation10], 1
    %21 = vsyncpa %s20, 0
    loop: start=0, step=1, limit=4
    $region2: #{tpu_custom_call.1} parent=1 // loop_pre_header
      _
    $region3: #{tpu_custom_call.1} parent=1 // loop_header
      %s23 = sphi 0, %s27
      %p24 = scmp.ge.s32.totalorder %s23, 4
      %s33 = sphi 0, %s35
      %s36 = sphi 0, %s33
      %s37 = sphi 0, %s36
      %s53 = sphi 0, %s37
      %s57 = sphi 0, %s57
      %s59 = sphi 0, %s57
      %s60 = sphi 0, %s59
      %s74 = sphi 0, %s60
      %s78 = sphi 0, %s78
      %s80 = sphi 0, %s78
      %s81 = sphi 0, %s80
      %s95 = sphi 0, %s81
      %s99 = sphi 0, %s99
      %s101 = sphi 0, %s99
      %s102 = sphi 0, %s101
      %s116 = sphi 0, %s102
      %s120 = sphi 0, %s120
      %s122 = sphi 0, %s120
      %s123 = sphi 0, %s122
      %s137 = sphi 0, %s123
      %s143 = sphi 0, %s145
      %s146 = sphi 0, %s143
      %s147 = sphi 0, %s146
      %s163 = sphi 0, %s147
      %s169 = sphi 0, %s171
      %s172 = sphi 0, %s169
      %s173 = sphi 0, %s172
      %s189 = sphi 0, %s173
    $region4: #{tpu_custom_call.1} parent=1 // loop_header_branch
      %26 = sbr.rel (%p24) target = $region8
    $region5: #{tpu_custom_call.1} parent=1 // loop_body
      %s28 = ssub.s32 %s23, 1
      %s29 = ssub.s32 %s23, 2
      %s30 = sadd.s32 %s23, 1
      %s31 = ssub.s32 %s23, %s30
      %p32 = scmp.eq.s32.totalorder %s31, 0
      %s34 = sadd.s32 %s33, 1
      %s35 = scalar_select %p32, %s33, %s34
      %p38 = pneg %p32
      %p39 = scmp.eq.s32.totalorder %s23, 1
      %p40 = por %p38, %p39
      %p41 = scmp.ne.s32.totalorder %s33, %s36
      %p42 = scmp.eq.s32.totalorder %s23, 0
      %p43 = por %p41, %p42
      %p44 = scmp.ne.s32.totalorder %s33, %s36
      %p45 = scmp.eq.s32.totalorder %s28, 1
      %p46 = por %p44, %p45
      %p47 = scmp.ne.s32.totalorder %s36, %s37
      %p48 = scmp.eq.s32.totalorder %s28, 0
      %p49 = por %p47, %p48
      %p50 = scmp.ne.s32.totalorder %s36, %s37
      %p51 = scmp.eq.s32.totalorder %s29, 1
      %p52 = por %p50, %p51
      %p54 = scmp.ne.s32.totalorder %s37, %s53
      %p55 = scmp.eq.s32.totalorder %s29, 0
      %p56 = por %p54, %p55
      %s58 = sadd.s32 %s57, 1
      %p61 = scmp.eq.s32.totalorder %s23, 1
      %p62 = scmp.ne.s32.totalorder %s57, %s59
      %p63 = scmp.eq.s32.totalorder %s23, 0
      %p64 = por %p62, %p63
      %p65 = scmp.ne.s32.totalorder %s57, %s59
      %p66 = scmp.eq.s32.totalorder %s28, 1
      %p67 = por %p65, %p66
      %p68 = scmp.ne.s32.totalorder %s59, %s60
      %p69 = scmp.eq.s32.totalorder %s28, 0
      %p70 = por %p68, %p69
      %p71 = scmp.ne.s32.totalorder %s59, %s60
      %p72 = scmp.eq.s32.totalorder %s29, 1
      %p73 = por %p71, %p72
      %p75 = scmp.ne.s32.totalorder %s60, %s74
      %p76 = scmp.eq.s32.totalorder %s29, 0
      %p77 = por %p75, %p76
      %s79 = sadd.s32 %s78, 1
      %p82 = scmp.eq.s32.totalorder %s23, 1
      %p83 = scmp.ne.s32.totalorder %s78, %s80
      %p84 = scmp.eq.s32.totalorder %s23, 0
      %p85 = por %p83, %p84
      %p86 = scmp.ne.s32.totalorder %s78, %s80
      %p87 = scmp.eq.s32.totalorder %s28, 1
      %p88 = por %p86, %p87
      %p89 = scmp.ne.s32.totalorder %s80, %s81
      %p90 = scmp.eq.s32.totalorder %s28, 0
      %p91 = por %p89, %p90
      %p92 = scmp.ne.s32.totalorder %s80, %s81
      %p93 = scmp.eq.s32.totalorder %s29, 1
      %p94 = por %p92, %p93
      %p96 = scmp.ne.s32.totalorder %s81, %s95
      %p97 = scmp.eq.s32.totalorder %s29, 0
      %p98 = por %p96, %p97
      %s100 = sadd.s32 %s99, 1
      %p103 = scmp.eq.s32.totalorder %s23, 1
      %p104 = scmp.ne.s32.totalorder %s99, %s101
      %p105 = scmp.eq.s32.totalorder %s23, 0
      %p106 = por %p104, %p105
      %p107 = scmp.ne.s32.totalorder %s99, %s101
      %p108 = scmp.eq.s32.totalorder %s28, 1
      %p109 = por %p107, %p108
      %p110 = scmp.ne.s32.totalorder %s101, %s102
      %p111 = scmp.eq.s32.totalorder %s28, 0
      %p112 = por %p110, %p111
      %p113 = scmp.ne.s32.totalorder %s101, %s102
      %p114 = scmp.eq.s32.totalorder %s29, 1
      %p115 = por %p113, %p114
      %p117 = scmp.ne.s32.totalorder %s102, %s116
      %p118 = scmp.eq.s32.totalorder %s29, 0
      %p119 = por %p117, %p118
      %s121 = sadd.s32 %s120, 1
      %p124 = scmp.eq.s32.totalorder %s23, 1
      %p125 = scmp.ne.s32.totalorder %s120, %s122
      %p126 = scmp.eq.s32.totalorder %s23, 0
      %p127 = por %p125, %p126
      %p128 = scmp.ne.s32.totalorder %s120, %s122
      %p129 = scmp.eq.s32.totalorder %s28, 1
      %p130 = por %p128, %p129
      %p131 = scmp.ne.s32.totalorder %s122, %s123
      %p132 = scmp.eq.s32.totalorder %s28, 0
      %p133 = por %p131, %p132
      %p134 = scmp.ne.s32.totalorder %s122, %s123
      %p135 = scmp.eq.s32.totalorder %s29, 1
      %p136 = por %p134, %p135
      %p138 = scmp.ne.s32.totalorder %s123, %s137
      %p139 = scmp.eq.s32.totalorder %s29, 0
      %p140 = por %p138, %p139
      %s141 = ssub.s32 %s23, %s30
      %p142 = scmp.eq.s32.totalorder %s141, 0
      %s144 = sadd.s32 %s143, 1
      %s145 = scalar_select %p142, %s143, %s144
      %p148 = pneg %p142
      %p149 = scmp.eq.s32.totalorder %s23, 1
      %p150 = por %p148, %p149
      %p151 = scmp.ne.s32.totalorder %s143, %s146
      %p152 = scmp.eq.s32.totalorder %s23, 0
      %p153 = por %p151, %p152
      %p154 = scmp.ne.s32.totalorder %s143, %s146
      %p155 = scmp.eq.s32.totalorder %s28, 1
      %p156 = por %p154, %p155
      %p157 = scmp.ne.s32.totalorder %s146, %s147
      %p158 = scmp.eq.s32.totalorder %s28, 0
      %p159 = por %p157, %p158
      %p160 = scmp.ne.s32.totalorder %s146, %s147
      %p161 = scmp.eq.s32.totalorder %s29, 1
      %p162 = por %p160, %p161
      %p164 = scmp.ne.s32.totalorder %s147, %s163
      %p165 = scmp.eq.s32.totalorder %s29, 0
      %p166 = por %p164, %p165
      %s167 = ssub.s32 %s23, %s30
      %p168 = scmp.eq.s32.totalorder %s167, 0
      %s170 = sadd.s32 %s169, 1
      %s171 = scalar_select %p168, %s169, %s170
      %p174 = pneg %p168
      %p175 = scmp.eq.s32.totalorder %s23, 1
      %p176 = por %p174, %p175
      %p177 = scmp.ne.s32.totalorder %s169, %s172
      %p178 = scmp.eq.s32.totalorder %s23, 0
      %p179 = por %p177, %p178
      %p180 = scmp.ne.s32.totalorder %s169, %s172
      %p181 = scmp.eq.s32.totalorder %s28, 1
      %p182 = por %p180, %p181
      %p183 = scmp.ne.s32.totalorder %s172, %s173
      %p184 = scmp.eq.s32.totalorder %s28, 0
      %p185 = por %p183, %p184
      %p186 = scmp.ne.s32.totalorder %s172, %s173
      %p187 = scmp.eq.s32.totalorder %s29, 1
      %p188 = por %p186, %p187
      %p190 = scmp.ne.s32.totalorder %s173, %s189
      %p191 = scmp.eq.s32.totalorder %s29, 0
      %p192 = por %p190, %p191
      %p193 = scmp.le.s32.totalorder 1, %s23
      %p194 = scmp.lt.s32.totalorder %s23, 3
      %p195 = pnand %p193, %p194
      %p196 = pneg %p195
      // Predicated region
      $region9: #{tpu_custom_call.1} parent=5 // pred_check
        _
      $region10: #{tpu_custom_call.1} parent=5 // pred_check_branch
        %198 = sbr.rel (%p195) target = $region12
      $region11: #{tpu_custom_call.1} parent=5 // pred_region
        %s199 = ssub.s32 %s23, 1
        // Predicated region
        $region13: #{tpu_custom_call.1} parent=11 // pred_check
          %p200 = pneg %p70
        $region14: #{tpu_custom_call.1} parent=11 // pred_check_branch
          %202 = sbr.rel (%p200) target = $region16
        $region15: #{tpu_custom_call.1} parent=11 // pred_region
          %s204 = ssub.s32 128, 128
          %205 = vsyncadd [#allocation6], %s204
          %s206 = sshll.u32 [#allocation5], 4
          %s207 = int_to_ptr.vmem [resolvable:$true] %s206
          %212 = dma.hbm_to_vmem [thread:$0]  %s1, 128, %s207, [#allocation6], 64, 64, 4
        $region16: #{tpu_custom_call.1} parent=11 // pred_fallthru
          _
        // Predicated region
        $region17: #{tpu_custom_call.1} parent=11 // pred_check
          %p213 = pneg %p91
        $region18: #{tpu_custom_call.1} parent=11 // pred_check_branch
          %215 = sbr.rel (%p213) target = $region20
        $region19: #{tpu_custom_call.1} parent=11 // pred_region
          _
        $region20: #{tpu_custom_call.1} parent=11 // pred_fallthru
          _
        // Predicated region
        $region21: #{tpu_custom_call.1} parent=11 // pred_check
          %p216 = pneg %p112
        $region22: #{tpu_custom_call.1} parent=11 // pred_check_branch
          %218 = sbr.rel (%p216) target = $region24
        $region23: #{tpu_custom_call.1} parent=11 // pred_region
          %s220 = ssub.s32 256, 256
          %221 = vsyncadd [#allocation6], %s220
          %s222 = sshll.u32 [#allocation7], 4
          %s223 = int_to_ptr.vmem [resolvable:$true] %s222
          %228 = dma.hbm_to_vmem [thread:$0]  %s3, 256, %s223, [#allocation6], 128, 128, 8
        $region24: #{tpu_custom_call.1} parent=11 // pred_fallthru
          _
        // Predicated region
        $region25: #{tpu_custom_call.1} parent=11 // pred_check
          %p229 = pneg %p133
        $region26: #{tpu_custom_call.1} parent=11 // pred_check_branch
          %231 = sbr.rel (%p229) target = $region28
        $region27: #{tpu_custom_call.1} parent=11 // pred_region
          _
        $region28: #{tpu_custom_call.1} parent=11 // pred_fallthru
          _
      $region12: #{tpu_custom_call.1} parent=5 // pred_fallthru
        _
      %p232 = scmp.lt.s32.totalorder %s23, 2
      // Predicated region
      $region29: #{tpu_custom_call.1} parent=5 // pred_check
        %p233 = pneg %p232
      $region30: #{tpu_custom_call.1} parent=5 // pred_check_branch
        %235 = sbr.rel (%p233) target = $region32
      $region31: #{tpu_custom_call.1} parent=5 // pred_region
        // Predicated region
        $region33: #{tpu_custom_call.1} parent=31 // pred_check
          %p236 = pneg %p43
        $region34: #{tpu_custom_call.1} parent=31 // pred_check_branch
          %238 = sbr.rel (%p236) target = $region36
        $region35: #{tpu_custom_call.1} parent=31 // pred_region
          %s239 = sand.u32 %s33, 1
          %s240 = scalar_lea.sflag [#allocation3], %s239
          %s241 = sand.u32 %s33, 1
          %s242 = smul.addr %s241, 4
          %s243 = scalar_lea.vmem [#allocation2], %s242
          %s245 = ssub.s32 64, 64
          %246 = vsyncadd %s240, %s245
          %s247 = smul.addr %s23, 2
          %s248 = smul.addr %s247, 32
          %s249 = scalar_lea.hbm %s0, %s248
          %s251 = sshll.u32 %s243, 4
          %s252 = int_to_ptr.vmem [resolvable:$true] %s251
          %254 = dma.hbm_to_vmem [thread:$0]  %s249, 64, %s252, %s240
        $region36: #{tpu_custom_call.1} parent=31 // pred_fallthru
          _
      $region32: #{tpu_custom_call.1} parent=5 // pred_fallthru
        _
      %p255 = scmp.le.s32.totalorder 1, %s23
      %p256 = scmp.lt.s32.totalorder %s23, 3
      %p257 = pnand %p255, %p256
      %p258 = pneg %p257
      // Predicated region
      $region37: #{tpu_custom_call.1} parent=5 // pred_check
        _
      $region38: #{tpu_custom_call.1} parent=5 // pred_check_branch
        %260 = sbr.rel (%p257) target = $region40
      $region39: #{tpu_custom_call.1} parent=5 // pred_region
        %s261 = ssub.s32 %s23, 1
        %s262 = sand.u32 %s36, 1
        %s263 = scalar_lea.sflag [#allocation3], %s262
        %s264 = sand.u32 %s36, 1
        %s265 = smul.addr %s264, 4
        %s266 = scalar_lea.vmem [#allocation2], %s265
        // Predicated region
        $region41: #{tpu_custom_call.1} parent=39 // pred_check
          %p267 = pneg %p49
        $region42: #{tpu_custom_call.1} parent=39 // pred_check_branch
          %269 = sbr.rel (%p267) target = $region44
        $region43: #{tpu_custom_call.1} parent=39 // pred_region
          %270 = dma.done %s263, 64
        $region44: #{tpu_custom_call.1} parent=39 // pred_fallthru
          _
        // Predicated region
        $region45: #{tpu_custom_call.1} parent=39 // pred_check
          %p271 = pneg %p70
        $region46: #{tpu_custom_call.1} parent=39 // pred_check_branch
          %273 = sbr.rel (%p271) target = $region48
        $region47: #{tpu_custom_call.1} parent=39 // pred_region
          %274 = dma.done [#allocation6], 128
        $region48: #{tpu_custom_call.1} parent=39 // pred_fallthru
          _
        // Predicated region
        $region49: #{tpu_custom_call.1} parent=39 // pred_check
          %p275 = pneg %p112
        $region50: #{tpu_custom_call.1} parent=39 // pred_check_branch
          %277 = sbr.rel (%p275) target = $region52
        $region51: #{tpu_custom_call.1} parent=39 // pred_region
          %278 = dma.done [#allocation6], 256
        $region52: #{tpu_custom_call.1} parent=39 // pred_fallthru
          _
        %s279 = sand.u32 %s36, 1
        %s280 = scalar_lea.sflag [#allocation3], %s279
        %s281 = sand.u32 %s36, 1
        %s282 = smul.addr %s281, 4
        %s283 = scalar_lea.vmem [#allocation2], %s282
        %p284 = pneg %p49
        %p285 = pneg %p46
        %p286 = pneg %p70
        %p287 = pneg %p67
        %p288 = pneg %p91
        %p289 = pneg %p88
        %p290 = pneg %p112
        %p291 = pneg %p109
        %p292 = pneg %p133
        %p293 = pneg %p130
        %p294 = pneg %p159
        %p295 = pneg %p156
        %s296 = sand.u32 %s146, 1
        %s297 = scalar_lea.sflag [#allocation4], %s296
        %s298 = sand.u32 %s146, 1
        %s299 = smul.addr %s298, 8
        %s300 = scalar_lea.vmem [#allocation8], %s299
        %p301 = pneg %p185
        %p302 = pneg %p182
        %s303 = sand.u32 %s172, 1
        %s304 = scalar_lea.sflag [#allocation10], %s303
        %s305 = sand.u32 %s172, 1
        %s306 = smul.addr %s305, 16
        %s307 = scalar_lea.vmem [#allocation9], %s306
        %v309 = vld [vmem:[%s266] sm:$0xf]
        %v310 = vunpack.c.l.bf16 %v309
        %v312 = vcombine.high %v310, %v310
        %314 = vrot.lane.b32.xlu0 %v310, 17
        %v315 = vpop.permute.xlu0 %314
        %316 = vrot.lane.b32.xlu0 %v312, 17
        %v317 = vpop.permute.xlu0 %316
        %v318 = vlaneseq
        %v319 = vand.u32 %v318, 127
        %vm320 = vcmp.lt.s32.totalorder %v319, 17
        %v321 = vsel %vm320, %v315, %v317
        %v322 = vsel %vm320, %v317, %v315
        %v323 = vld [vmem:[%s4] sm:$0x3]
        %v325 = vlaneseq
        %v326 = vshrl.u32 %v325, 7
        %v327 = vsub.s32 0, %v326
        %v328 = vrot.slane %v323, %v327
        %v329 = vlaneseq
        %v330 = vshrl.u32 %v329, 7
        %v331 = vsub.s32 1, %v330
        %v332 = vrot.slane %v323, %v331
        %v335 = vmul.f32 %v322, %v328
        %v336 = vmul.f32 %v321, %v332
        %337 = vrot.lane.b32.xlu0 %v310, 16
        %v338 = vpop.permute.xlu0 %337
        %339 = vrot.lane.b32.xlu0 %v312, 16
        %v340 = vpop.permute.xlu0 %339
        %vm341 = vcmp.lt.s32.totalorder %v319, 16
        %v342 = vsel %vm341, %v338, %v340
        %v343 = vsel %vm341, %v340, %v338
        %s344 = scalar_lea.vmem %s4, 2
        %v345 = vld [vmem:[%s344] sm:$0x3]
        %v347 = vlaneseq
        %v348 = vshrl.u32 %v347, 7
        %v349 = vsub.s32 0, %v348
        %v350 = vrot.slane %v345, %v349
        %v351 = vlaneseq
        %v352 = vshrl.u32 %v351, 7
        %v353 = vsub.s32 1, %v352
        %v354 = vrot.slane %v345, %v353
        %v357 = vmul.f32 %v343, %v350
        %v358 = vmul.f32 %v342, %v354
        %359 = vrot.lane.b32.xlu0 %v310, 15
        %v360 = vpop.permute.xlu0 %359
        %361 = vrot.lane.b32.xlu0 %v312, 15
        %v362 = vpop.permute.xlu0 %361
        %vm363 = vcmp.lt.s32.totalorder %v319, 15
        %v364 = vsel %vm363, %v360, %v362
        %v365 = vsel %vm363, %v362, %v360
        %s366 = scalar_lea.vmem %s4, 4
        %v367 = vld [vmem:[%s366] sm:$0x3]
        %v369 = vlaneseq
        %v370 = vshrl.u32 %v369, 7
        %v371 = vsub.s32 0, %v370
        %v372 = vrot.slane %v367, %v371
        %v373 = vlaneseq
        %v374 = vshrl.u32 %v373, 7
        %v375 = vsub.s32 1, %v374
        %v376 = vrot.slane %v367, %v375
        %v379 = vmul.f32 %v365, %v372
        %v380 = vmul.f32 %v364, %v376
        %381 = vrot.lane.b32.xlu0 %v310, 1
        %v382 = vpop.permute.xlu0 %381
        %383 = vrot.lane.b32.xlu0 %v312, 1
        %v384 = vpop.permute.xlu0 %383
        %vm385 = vcmp.lt.s32.totalorder %v319, 1
        %v386 = vsel %vm385, %v382, %v384
        %v387 = vsel %vm385, %v384, %v382
        %s388 = scalar_lea.vmem %s4, 6
        %v389 = vld [vmem:[%s388] sm:$0x3]
        %v391 = vlaneseq
        %v392 = vshrl.u32 %v391, 7
        %v393 = vsub.s32 0, %v392
        %v394 = vrot.slane %v389, %v393
        %v395 = vlaneseq
        %v396 = vshrl.u32 %v395, 7
        %v397 = vsub.s32 1, %v396
        %v398 = vrot.slane %v389, %v397
        %v401 = vmul.f32 %v387, %v394
        %v402 = vmul.f32 %v386, %v398
        %403 = vrot.lane.b32.xlu0 %v310, 127
        %v404 = vpop.permute.xlu0 %403
        %405 = vrot.lane.b32.xlu0 %v312, 127
        %v406 = vpop.permute.xlu0 %405
        %vm407 = vcmp.lt.s32.totalorder %v319, 127
        %v408 = vsel %vm407, %v404, %v406
        %v409 = vsel %vm407, %v406, %v404
        %s410 = scalar_lea.vmem %s4, 10
        %v411 = vld [vmem:[%s410] sm:$0x3]
        %v413 = vlaneseq
        %v414 = vshrl.u32 %v413, 7
        %v415 = vsub.s32 0, %v414
        %v416 = vrot.slane %v411, %v415
        %v417 = vlaneseq
        %v418 = vshrl.u32 %v417, 7
        %v419 = vsub.s32 1, %v418
        %v420 = vrot.slane %v411, %v419
        %v423 = vmul.f32 %v408, %v416
        %v424 = vmul.f32 %v409, %v420
        %425 = vrot.lane.b32.xlu0 %v310, 113
        %v426 = vpop.permute.xlu0 %425
        %427 = vrot.lane.b32.xlu0 %v312, 113
        %v428 = vpop.permute.xlu0 %427
        %vm429 = vcmp.lt.s32.totalorder %v319, 113
        %v430 = vsel %vm429, %v426, %v428
        %v431 = vsel %vm429, %v428, %v426
        %s432 = scalar_lea.vmem %s4, 12
        %v433 = vld [vmem:[%s432] sm:$0x3]
        %v435 = vlaneseq
        %v436 = vshrl.u32 %v435, 7
        %v437 = vsub.s32 0, %v436
        %v438 = vrot.slane %v433, %v437
        %v439 = vlaneseq
        %v440 = vshrl.u32 %v439, 7
        %v441 = vsub.s32 1, %v440
        %v442 = vrot.slane %v433, %v441
        %v445 = vmul.f32 %v430, %v438
        %v446 = vmul.f32 %v431, %v442
        %447 = vrot.lane.b32.xlu0 %v310, 112
        %v448 = vpop.permute.xlu0 %447
        %449 = vrot.lane.b32.xlu0 %v312, 112
        %v450 = vpop.permute.xlu0 %449
        %vm451 = vcmp.lt.s32.totalorder %v319, 112
        %v452 = vsel %vm451, %v448, %v450
        %v453 = vsel %vm451, %v450, %v448
        %s454 = scalar_lea.vmem %s4, 14
        %v455 = vld [vmem:[%s454] sm:$0x3]
        %v457 = vlaneseq
        %v458 = vshrl.u32 %v457, 7
        %v459 = vsub.s32 0, %v458
        %v460 = vrot.slane %v455, %v459
        %v461 = vlaneseq
        %v462 = vshrl.u32 %v461, 7
        %v463 = vsub.s32 1, %v462
        %v464 = vrot.slane %v455, %v463
        %v467 = vmul.f32 %v452, %v460
        %v468 = vmul.f32 %v453, %v464
        %469 = vrot.lane.b32.xlu0 %v310, 111
        %v470 = vpop.permute.xlu0 %469
        %471 = vrot.lane.b32.xlu0 %v312, 111
        %v472 = vpop.permute.xlu0 %471
        %vm473 = vcmp.lt.s32.totalorder %v319, 111
        %v474 = vsel %vm473, %v470, %v472
        %v475 = vsel %vm473, %v472, %v470
        %s476 = scalar_lea.vmem %s4, 16
        %v477 = vld [vmem:[%s476] sm:$0x3]
        %v479 = vlaneseq
        %v480 = vshrl.u32 %v479, 7
        %v481 = vsub.s32 0, %v480
        %v482 = vrot.slane %v477, %v481
        %v483 = vlaneseq
        %v484 = vshrl.u32 %v483, 7
        %v485 = vsub.s32 1, %v484
        %v486 = vrot.slane %v477, %v485
        %v489 = vmul.f32 %v474, %v482
        %v490 = vmul.f32 %v475, %v486
        %v493 = vrot.slane %v357, 4
        %v494 = vrot.slane %v358, 4
        %v499 = vrot.slane %v401, 4
        %v500 = vrot.slane %v402, 4
        %v505 = vrot.slane %v423, 4
        %v506 = vrot.slane %v424, 4
        %v511 = vrot.slane %v467, 4
        %v512 = vrot.slane %v468, 4
        %vm515 = vcmask 1043456
        %v516 = vsel %vm515, %v335, %v493
        %v517 = vsel %vm515, %v336, %v494
        %v518 = vsel %vm515, %v379, %v499
        %v519 = vsel %vm515, %v380, %v500
        %v520 = vsel %vm515, %v310, %v505
        %v521 = vsel %vm515, %v312, %v506
        %v522 = vsel %vm515, %v445, %v511
        %v523 = vsel %vm515, %v446, %v512
        %v524 = vld [vmem:[#allocation5] sm:$0xf]
        %v525 = vld [vmem:[#allocation5 + $0x4] sm:$0x3]
        %v526 = vpack.c.bf16 %v518, %v516
        %v527 = vpack.c.bf16 %v519, %v517
        %v528 = vpack.c.bf16 %v522, %v520
        %v529 = vpack.c.bf16 %v523, %v521
        %v530 = vpack.c.bf16 %v489, %v489
        %v531 = vpack.c.bf16 %v490, %v490
        %v532 = vld [vmem:[%s2] sm:$0xff]
        %v533 = vld [vmem:[%s2 + $0x8] sm:$0xf]
        %535 = vset.pattern.permute.xlu0 0
        %536 = vperm.xlu0 %535, %v532
        %v537 = vpop.permute.xlu0 %536
        %540 = vset.pattern.permute.xlu0 0
        %541 = vperm.xlu0 %540, %v533
        %v542 = vpop.permute.xlu0 %541
        %v546 = vunpack.c.l.b16 %v524
        %v547 = vunpack.c.l.b16 %v525
        %v548 = vpack.c.b16 %v547, %v546
        %vm549 = vcmask 293888
        %v551 = vsel %vm549, %v548, 0
        %vm553 = vcmask 1041408
        %v555 = vsel %vm553, %v530, 0
        %v558 = vsel %vm553, %v531, 0
        %560 = vmatprep.subr.bf16.mxu0 0
        %561 = vmatpush1.bf16.msra.mxu0 0
        %562 = vmatprep.subr.bf16.mxu0 0
        %563 = vmatpush1.bf16.msra.mxu0 0
        %564 = vmatprep.subr.bf16.mxu0 0
        %565 = vmatpush1.bf16.msra.mxu0 0
        %566 = vmatprep.subr.bf16.mxu0 0
        %567 = vmatpush1.bf16.msra.mxu0 0
        %568 = vmatprep.subr.bf16.mxu0 0
        %569 = vmatpush1.bf16.msra.mxu0 0
        %570 = vmatprep.subr.bf16.mxu0 %v558
        %571 = vmatpush1.bf16.msra.mxu0 %v555
        %572 = vmatprep.subr.bf16.mxu0 %v529
        %573 = vmatpush1.bf16.msra.mxu0 %v528
        %574 = vmatprep.subr.bf16.mxu0 %v527
        %575 = vmatpush1.bf16.msra.mxu0 %v526
        %576 = vmatprep.subr.bf16.mxu0 0
        %577 = vmatpush2.bf16.msra.mxu0 0
        %578 = vmatprep.subr.bf16.mxu0 0
        %579 = vmatpush2.bf16.msra.mxu0 0
        %580 = vmatprep.subr.bf16.mxu0 0
        %581 = vmatpush2.bf16.msra.mxu0 0
        %582 = vmatprep.subr.bf16.mxu0 0
        %583 = vmatpush2.bf16.msra.mxu0 0
        %584 = vmatprep.subr.bf16.mxu0 0
        %585 = vmatpush2.bf16.msra.mxu0 0
        %586 = vmatprep.subr.bf16.mxu0 0
        %587 = vmatpush2.bf16.msra.mxu0 0
        %588 = vmatprep.subr.bf16.mxu0 0
        %589 = vmatpush2.bf16.msra.mxu0 0
        %590 = vmatprep.subr.bf16.mxu0 0
        %591 = vmatpush2.bf16.msra.mxu0 0
        %592 = vmatprep.mubr.bf16.mxu0 0
        %593 = vmatmul.mubr.bf16.gmra.mxu0 %v551
        %v594 = vpop.f32.mrf.mxu0
        %v595 = vadd.f32 %v537, %v594
        %v596 = vpop.f32.mrf.mxu0
        %v597 = vadd.f32 %v537, %v596
        %v598 = vpop.f32.mrf.mxu0
        %v599 = vadd.f32 %v542, %v598
        %v600 = vpop.f32.mrf.mxu0
        %v601 = vadd.f32 %v542, %v600
        %602 = vdwg.mxu0
        %v605 = vrot.slane %v595, 1
        %v606 = vrot.slane %v597, 1
        %v609 = vmax.f32 %v595, %v605
        %v610 = vmax.f32 %v597, %v606
        %v611 = vlaneseq
        %v612 = vshrl.u32 %v611, 7
        %v613 = vsub.s32 0, %v612
        %v614 = vrot.slane %v609, %v613
        %v615 = vlaneseq
        %v616 = vshrl.u32 %v615, 7
        %v617 = vsub.s32 0, %v616
        %v618 = vrot.slane %v610, %v617
        %v619 = vsub.f32 %v595, %v614
        %v620 = vsub.f32 %v597, %v618
        %v621 = vmul.f32 %v619, 1.442695
        %v622 = vpow.pop %v621
        %v623 = vmul.f32 %v620, 1.442695
        %v624 = vpow.pop %v623
        %v627 = vrot.slane %v622, 1
        %v628 = vrot.slane %v624, 1
        %v631 = vadd.f32 %v622, %v627
        %v632 = vadd.f32 %v624, %v628
        %v633 = vrcp.pop %v631
        %v634 = vrcp.pop %v632
        %v635 = vlaneseq
        %v636 = vshrl.u32 %v635, 7
        %v637 = vsub.s32 0, %v636
        %v638 = vrot.slane %v633, %v637
        %v639 = vlaneseq
        %v640 = vshrl.u32 %v639, 7
        %v641 = vsub.s32 0, %v640
        %v642 = vrot.slane %v634, %v641
        %v643 = vmul.f32 %v622, %v638
        %v644 = vmul.f32 %v624, %v642
        %v647 = vcombine.low %v643, %v644
        %v649 = vunpack.c.l.s4 1983009808
        %v650 = vunpack.c.0.s8 %v649
        %v651 = vlaneseq
        %v652 = vshrl.u32 %v651, 7
        %v653 = vsub.s32 %v650, %v652
        %v654 = vrot.slane %v647, %v653
        %656 = vst [vmem:[%s300] sm:$0xf] %v654
        %v657 = vld [vmem:[#allocation7] sm:$0xff]
        %v658 = vmul.f32 %v595, 0.1
        %v659 = vmul.f32 %v597, 0.1
        %v661 = vcombine.high %v657, %v657
        %v662 = vrot.slane %v657, 6
        %v663 = vrot.slane %v661, 6
        %v666 = vmul.f32 %v658, %v662
        %v667 = vmul.f32 %v659, %v663
        %v668 = vcombine.low %v657, %v657
        %v670 = vadd.f32 %v666, %v668
        %v671 = vadd.f32 %v667, %v657
        %v672 = vmul.f32 %v595, 0.2
        %v673 = vmul.f32 %v597, 0.2
        %v674 = vmul.f32 %v672, 1.442695
        %v675 = vpow.pop %v674
        %v676 = vmul.f32 %v673, 1.442695
        %v677 = vpow.pop %v676
        %v678 = vmul.f32 %v675, %v668
        %v679 = vmul.f32 %v677, %v657
        %v680 = vmul.f32 %v678, 0.5
        %v681 = vmul.f32 %v679, 0.5
        %v684 = vrot.slane %v680, 2
        %v685 = vrot.slane %v681, 2
        %v688 = vsub.f32 %v670, %v684
        %v689 = vsub.f32 %v671, %v685
        %v690 = vadd.f32 %v670, %v684
        %v691 = vadd.f32 %v671, %v685
        %v694 = vrot.slane %v688, 4
        %v695 = vrot.slane %v689, 4
        %v700 = vrot.slane %v690, 2
        %v701 = vrot.slane %v691, 2
        %v704 = vsel %vm553, %v694, %v700
        %v705 = vsel %vm553, %v695, %v701
        %v708 = vcombine.low %v704, %v705
        %710 = vst [vmem:[%s307] sm:$0xff] %v708
        %v711 = vlaneseq
        %v712 = vshrl.u32 %v711, 7
        %v713 = vsub.s32 2, %v712
        %v714 = vrot.slane %v609, %v713
        %v715 = vlaneseq
        %v716 = vshrl.u32 %v715, 7
        %v717 = vsub.s32 2, %v716
        %v718 = vrot.slane %v610, %v717
        %v719 = vsub.f32 %v595, %v714
        %v720 = vsub.f32 %v597, %v718
        %v721 = vmul.f32 %v719, 1.442695
        %v722 = vpow.pop %v721
        %v723 = vmul.f32 %v720, 1.442695
        %v724 = vpow.pop %v723
        %v727 = vrot.slane %v722, 1
        %v728 = vrot.slane %v724, 1
        %v731 = vadd.f32 %v722, %v727
        %v732 = vadd.f32 %v724, %v728
        %v733 = vrcp.pop %v731
        %v734 = vrcp.pop %v732
        %v735 = vlaneseq
        %v736 = vshrl.u32 %v735, 7
        %v737 = vsub.s32 2, %v736
        %v738 = vrot.slane %v733, %v737
        %v739 = vlaneseq
        %v740 = vshrl.u32 %v739, 7
        %v741 = vsub.s32 2, %v740
        %v742 = vrot.slane %v734, %v741
        %v743 = vmul.f32 %v722, %v738
        %v744 = vmul.f32 %v724, %v742
        %v747 = vcombine.low %v743, %v744
        %v749 = vunpack.c.l.s4 1983009808
        %v750 = vunpack.c.0.s8 %v749
        %v751 = vlaneseq
        %v752 = vshrl.u32 %v751, 7
        %v753 = vsub.s32 %v750, %v752
        %v754 = vrot.slane %v747, %v753
        %v755 = vcombine.high %v754, %v754
        %s757 = scalar_lea.vmem %s300, 4 [#allocation8]
        %758 = vst [vmem:[%s757] sm:$0xf] %v755
        %s759 = scalar_lea.vmem [#allocation7], 8
        %v760 = vld [vmem:[%s759] sm:$0xff]
        %v761 = vmul.f32 %v599, 0.1
        %v762 = vmul.f32 %v601, 0.1
        %v764 = vcombine.high %v760, %v760
        %v765 = vrot.slane %v760, 2
        %v766 = vrot.slane %v764, 2
        %v769 = vmul.f32 %v761, %v765
        %v770 = vmul.f32 %v762, %v766
        %v772 = vadd.f32 %v769, %v760
        %v773 = vadd.f32 %v770, %v764
        %v774 = vmul.f32 %v599, 0.2
        %v775 = vmul.f32 %v601, 0.2
        %v776 = vmul.f32 %v774, 1.442695
        %v777 = vpow.pop %v776
        %v778 = vmul.f32 %v775, 1.442695
        %v779 = vpow.pop %v778
        %v780 = vmul.f32 %v777, %v760
        %v781 = vmul.f32 %v779, %v764
        %v782 = vmul.f32 %v780, 0.5
        %v783 = vmul.f32 %v781, 0.5
        %v786 = vrot.slane %v782, 2
        %v787 = vrot.slane %v783, 2
        %v790 = vsub.f32 %v772, %v786
        %v791 = vsub.f32 %v773, %v787
        %v792 = vadd.f32 %v772, %v786
        %v793 = vadd.f32 %v773, %v787
        %v796 = vrot.slane %v792, 6
        %v797 = vrot.slane %v793, 6
        %v800 = vsel %vm553, %v790, %v796
        %v801 = vsel %vm553, %v791, %v797
        %v804 = vcombine.low %v800, %v801
        %s806 = scalar_lea.vmem %s307, 8 [#allocation9]
        %807 = vst [vmem:[%s806] sm:$0xff] %v804
        %s808 = sand.u32 %s146, 1
        %s809 = scalar_lea.sflag [#allocation4], %s808
        %s810 = sand.u32 %s146, 1
        %s811 = smul.addr %s810, 8
        %s812 = scalar_lea.vmem [#allocation8], %s811
        %s813 = sand.u32 %s172, 1
        %s814 = scalar_lea.sflag [#allocation10], %s813
        %s815 = sand.u32 %s172, 1
        %s816 = smul.addr %s815, 16
        %s817 = scalar_lea.vmem [#allocation9], %s816
        // Predicated region
        $region53: #{tpu_custom_call.1} parent=39 // pred_check
          %p818 = pneg %p156
        $region54: #{tpu_custom_call.1} parent=39 // pred_check_branch
          %820 = sbr.rel (%p818) target = $region56
        $region55: #{tpu_custom_call.1} parent=39 // pred_region
          %s822 = ssub.s32 128, 128
          %823 = vsyncadd %s809, %s822
          %s824 = smul.addr %s28, 4
          %s825 = smul.addr %s824, 32
          %s826 = scalar_lea.hbm %s5, %s825
          %s827 = sshll.u32 %s812, 4
          %s828 = int_to_ptr.vmem [resolvable:$true] %s827
          %833 = dma.vmem_to_hbm [thread:$0]  %s828, 128, %s826, %s809, 64, 64, 4
        $region56: #{tpu_custom_call.1} parent=39 // pred_fallthru
          _
        // Predicated region
        $region57: #{tpu_custom_call.1} parent=39 // pred_check
          %p834 = pneg %p182
        $region58: #{tpu_custom_call.1} parent=39 // pred_check_branch
          %836 = sbr.rel (%p834) target = $region60
        $region59: #{tpu_custom_call.1} parent=39 // pred_region
          %s838 = ssub.s32 256, 256
          %839 = vsyncadd %s814, %s838
          %s840 = smul.addr %s28, 4
          %s841 = smul.addr %s840, 64
          %s842 = scalar_lea.hbm %s6, %s841
          %s843 = sshll.u32 %s817, 4
          %s844 = int_to_ptr.vmem [resolvable:$true] %s843
          %849 = dma.vmem_to_hbm [thread:$0]  %s844, 256, %s842, %s814, 128, 128, 8
        $region60: #{tpu_custom_call.1} parent=39 // pred_fallthru
          _
      $region40: #{tpu_custom_call.1} parent=5 // pred_fallthru
        _
      %p850 = scmp.le.s32.totalorder 2, %s23
      // Predicated region
      $region61: #{tpu_custom_call.1} parent=5 // pred_check
        %p851 = pneg %p850
      $region62: #{tpu_custom_call.1} parent=5 // pred_check_branch
        %853 = sbr.rel (%p851) target = $region64
      $region63: #{tpu_custom_call.1} parent=5 // pred_region
        %s854 = ssub.s32 %s23, 2
        // Predicated region
        $region65: #{tpu_custom_call.1} parent=63 // pred_check
          %p855 = pneg %p162
        $region66: #{tpu_custom_call.1} parent=63 // pred_check_branch
          %857 = sbr.rel (%p855) target = $region68
        $region67: #{tpu_custom_call.1} parent=63 // pred_region
          %s858 = sand.u32 %s147, 1
          %s859 = scalar_lea.sflag [#allocation4], %s858
          %s860 = sand.u32 %s147, 1
          %s861 = smul.addr %s860, 8
          %s862 = scalar_lea.vmem [#allocation8], %s861
          %863 = dma.done %s859, 128
        $region68: #{tpu_custom_call.1} parent=63 // pred_fallthru
          _
        // Predicated region
        $region69: #{tpu_custom_call.1} parent=63 // pred_check
          %p864 = pneg %p188
        $region70: #{tpu_custom_call.1} parent=63 // pred_check_branch
          %866 = sbr.rel (%p864) target = $region72
        $region71: #{tpu_custom_call.1} parent=63 // pred_region
          %s867 = sand.u32 %s173, 1
          %s868 = scalar_lea.sflag [#allocation10], %s867
          %s869 = sand.u32 %s173, 1
          %s870 = smul.addr %s869, 16
          %s871 = scalar_lea.vmem [#allocation9], %s870
          %872 = dma.done %s868, 256
        $region72: #{tpu_custom_call.1} parent=63 // pred_fallthru
          _
      $region64: #{tpu_custom_call.1} parent=5 // pred_fallthru
        _
    $region6: #{tpu_custom_call.1} parent=1 // loop_footer
      %s27 = sadd.s32 1, %s23
    $region7: #{tpu_custom_call.1} parent=1 // loop_footer_branch
      %22 = sbr.rel target = $region3
    $region8: #{tpu_custom_call.1} parent=1 // loop_exit
      _
    %873 = vsyncpa [#allocation3], 1
    %s874 = scalar_lea.sflag [#allocation3], 1
    %875 = vsyncpa %s874, 1
    %876 = vsyncpa [#allocation6], 1
    %877 = vsyncpa [#allocation4], 1
    %s878 = scalar_lea.sflag [#allocation4], 1
    %879 = vsyncpa %s878, 1
    %880 = vsyncpa [#allocation10], 1
    %s881 = scalar_lea.sflag [#allocation10], 1
    %882 = vsyncpa %s881, 1

</llo_original>
